<compile_context>
chip_gen: v5e
topology: v5e:2x2
jax: 0.10.0
libtpu: 0.0.40
codegen_flags: <defaults>
</compile_context>

<pallas_src>
import jax
import jax.numpy as jnp
from jax.experimental import pallas as pl
from jax.experimental.pallas import tpu as pltpu


def _ranker_kernel(x_ref, w1_ref, b1_ref, w2_ref, b2_ref, w3_ref, b3_ref, o_ref):
    x = x_ref[...]
    # Layers 1-2 on the MXU with f32 accumulation; bias add + ReLU on the VPU.
    h1 = jnp.dot(x, w1_ref[...], preferred_element_type=jnp.float32) + b1_ref[...]
    h1 = jnp.maximum(h1, 0.0)
    h2 = jnp.dot(h1, w2_ref[...], preferred_element_type=jnp.float32) + b2_ref[...]
    h2 = jnp.maximum(h2, 0.0)
    # Final projection to one score per row: VPU multiply + cross-lane reduce (keeps the
    # MXU free, avoids an N=1 matmul), bias folded in, lane-dense (1, TB) store.
    s = jnp.sum(h2 * w3_ref[...], axis=-1)                          # (TB,)
    o_ref[...] = (s[None, :] + b3_ref[...]).astype(o_ref.dtype)     # (1, TB)


def ranker_forward(x, params, *, block_b=512):
    """x: (B, input_dim) float32. Returns (B,) float32 (== squeeze(-1) of the (B, 1) output).

    block_b: rows per grid step. When B > block_b it must be a multiple of 128.
    At these weight sizes a 512-row tile (double-buffered) stays far below the 32 MiB
    scoped-VMEM default on every generation (v5e / v6e / v7x-64MiB).
    """
    w1, b1, w2, b2, w3, b3 = params
    B, D = x.shape
    H1 = w1.shape[1]
    H2 = w2.shape[1]

    tb = B if B <= block_b else block_b
    grid = (pl.cdiv(B, tb),)

    # Constant index_map -> block index never changes -> Pallas keeps these VMEM-resident
    # (no per-step re-DMA of the tiny weights/biases).
    const = lambda shape: pl.BlockSpec(shape, lambda i: (0,) * len(shape))

    out = pl.pallas_call(
        _ranker_kernel,
        out_shape=jax.ShapeDtypeStruct((1, B), jnp.float32),
        grid=grid,
        in_specs=[
            pl.BlockSpec((tb, D), lambda i: (i, 0)),   # batch-tiled activations (pipelined)
            const((D, H1)), const((1, H1)),            # layer 1
            const((H1, H2)), const((1, H2)),           # layer 2
            const((1, H2)), const((1, 1)),             # layer 3: row weight + scalar bias
        ],
        out_specs=pl.BlockSpec((1, tb), lambda i: (0, i)),   # lane-dense score slab
        compiler_params=pltpu.CompilerParams(
            dimension_semantics=("parallel",),
        ),
    )(x, w1, b1, w2, b2, w3, b3)
    return out[0]  # (B,) == squeeze(-1)


def init_params(key, input_dim, hidden_dims=(128, 32)):
    """Deterministic synthetic init matching nn.Linear fan-in bounds.

    Hidden layers stored as (in, out); final layer stored as a (1, in) row + (1, 1) bias.
    """
    params = []
    cur = input_dim
    for h in hidden_dims:
        key, kw, kb = jax.random.split(key, 3)
        bound = 1.0 / jnp.sqrt(float(cur))
        params.append(jax.random.uniform(kw, (cur, h), jnp.float32, -bound, bound))
        params.append(jax.random.uniform(kb, (1, h), jnp.float32, -bound, bound))
        cur = h
    key, kw, kb = jax.random.split(key, 3)
    bound = 1.0 / jnp.sqrt(float(cur))
    params.append(jax.random.uniform(kw, (1, cur), jnp.float32, -bound, bound))  # w3 row
    params.append(jax.random.uniform(kb, (1, 1), jnp.float32, -bound, bound))    # b3
    return params


def ranker_reference(x, params):
    w1, b1, w2, b2, w3, b3 = params
    h1 = jnp.maximum(x @ w1 + b1, 0.0)
    h2 = jnp.maximum(h1 @ w2 + b2, 0.0)
    return (h2 @ w3.T + b3)[:, 0]


if __name__ == "__main__":
    key = jax.random.PRNGKey(0)
    B, INPUT_DIM = 256, 64
    kx, kp = jax.random.split(key)
    x = jax.random.normal(kx, (B, INPUT_DIM), jnp.float32)
    params = init_params(kp, INPUT_DIM, hidden_dims=(128, 32))

    # block_b=128 -> grid=(2,): exercises the batch-tile pipeline even at this small size.
    out = ranker_forward(x, params, block_b=128)
    out = jax.block_until_ready(out)

    ref = ranker_reference(x, params)
    assert out.shape == (B,), out.shape
    assert jnp.allclose(out, ref, atol=1e-4, rtol=1e-4), (out, ref)
    print("KERNEL_OK")
</pallas_src>

<mosaic_0001>
module attributes {stable_mosaic.version = 11 : i64} {
  func.func @_ranker_kernel(%arg0: i32, %arg1: memref<128x64xf32, #tpu.memory_space<vmem>>, %arg2: memref<64x128xf32, #tpu.memory_space<vmem>>, %arg3: memref<1x128xf32, #tpu.memory_space<vmem>>, %arg4: memref<128x32xf32, #tpu.memory_space<vmem>>, %arg5: memref<1x32xf32, #tpu.memory_space<vmem>>, %arg6: memref<1x32xf32, #tpu.memory_space<vmem>>, %arg7: memref<1x1xf32, #tpu.memory_space<vmem>>, %arg8: memref<1x128xf32, #tpu.memory_space<vmem>>) attributes {dimension_semantics = [#tpu.dimension_semantics<parallel>], iteration_bounds = array<i64: 2>, scalar_prefetch = 0 : i64, scratch_operands = 0 : i64, tpu.core_type = #tpu.core_type<tc>, window_params = [{transform_indices = @transform_0, window_bounds = array<i64: 128, 64>}, {pipeline_mode = #tpu.pipeline_mode<synchronous>, transform_indices = @transform_1, window_bounds = array<i64: 64, 128>}, {pipeline_mode = #tpu.pipeline_mode<synchronous>, transform_indices = @transform_2, window_bounds = array<i64: 1, 128>}, {pipeline_mode = #tpu.pipeline_mode<synchronous>, transform_indices = @transform_3, window_bounds = array<i64: 128, 32>}, {pipeline_mode = #tpu.pipeline_mode<synchronous>, transform_indices = @transform_4, window_bounds = array<i64: 1, 32>}, {pipeline_mode = #tpu.pipeline_mode<synchronous>, transform_indices = @transform_5, window_bounds = array<i64: 1, 32>}, {pipeline_mode = #tpu.pipeline_mode<synchronous>, transform_indices = @transform_6, window_bounds = array<i64: 1, 1>}, {transform_indices = @transform_7, window_bounds = array<i64: 1, 128>}]} {
    %c0 = arith.constant 0 : index
    %c0_0 = arith.constant 0 : index
    %0 = vector.load %arg1[%c0, %c0_0] : memref<128x64xf32, #tpu.memory_space<vmem>>, vector<128x64xf32>
    %c0_1 = arith.constant 0 : index
    %c0_2 = arith.constant 0 : index
    %1 = vector.load %arg2[%c0_1, %c0_2] : memref<64x128xf32, #tpu.memory_space<vmem>>, vector<64x128xf32>
    %cst = arith.constant dense<0.000000e+00> : vector<128x128xf32>
    %2 = tpu.matmul %0, %1, %cst {dimension_numbers = #tpu.dot_dimension_numbers<[1], [0], [0], [1], [0, 0, 1, 1], [], []>} : vector<128x64xf32>, vector<64x128xf32>, vector<128x128xf32> -> vector<128x128xf32>
    %c0_3 = arith.constant 0 : index
    %c0_4 = arith.constant 0 : index
    %3 = vector.load %arg3[%c0_3, %c0_4] : memref<1x128xf32, #tpu.memory_space<vmem>>, vector<1x128xf32>
    %4 = vector.broadcast %3 : vector<1x128xf32> to vector<128x128xf32>
    %5 = arith.addf %2, %4 : vector<128x128xf32>
    %cst_5 = arith.constant 0.000000e+00 : f32
    %6 = vector.broadcast %cst_5 : f32 to vector<128x128xf32>
    %7 = arith.maximumf %5, %6 : vector<128x128xf32>
    %c0_6 = arith.constant 0 : index
    %c0_7 = arith.constant 0 : index
    %8 = vector.load %arg4[%c0_6, %c0_7] : memref<128x32xf32, #tpu.memory_space<vmem>>, vector<128x32xf32>
    %cst_8 = arith.constant dense<0.000000e+00> : vector<128x32xf32>
    %9 = tpu.matmul %7, %8, %cst_8 {dimension_numbers = #tpu.dot_dimension_numbers<[1], [0], [0], [1], [0, 0, 1, 1], [], []>} : vector<128x128xf32>, vector<128x32xf32>, vector<128x32xf32> -> vector<128x32xf32>
    %c0_9 = arith.constant 0 : index
    %c0_10 = arith.constant 0 : index
    %10 = vector.load %arg5[%c0_9, %c0_10] : memref<1x32xf32, #tpu.memory_space<vmem>>, vector<1x32xf32>
    %11 = vector.broadcast %10 : vector<1x32xf32> to vector<128x32xf32>
    %12 = arith.addf %9, %11 : vector<128x32xf32>
    %cst_11 = arith.constant 0.000000e+00 : f32
    %13 = vector.broadcast %cst_11 : f32 to vector<128x32xf32>
    %14 = arith.maximumf %12, %13 : vector<128x32xf32>
    %c0_12 = arith.constant 0 : index
    %c0_13 = arith.constant 0 : index
    %15 = vector.load %arg6[%c0_12, %c0_13] : memref<1x32xf32, #tpu.memory_space<vmem>>, vector<1x32xf32>
    %16 = vector.broadcast %15 : vector<1x32xf32> to vector<128x32xf32>
    %17 = arith.mulf %14, %16 : vector<128x32xf32>
    %cst_14 = arith.constant dense<0.000000e+00> : vector<128xf32>
    %18 = vector.multi_reduction <add>, %17, %cst_14 [1] : vector<128x32xf32> to vector<128xf32>
    %19 = vector.shape_cast %18 : vector<128xf32> to vector<1x128xf32>
    %c0_15 = arith.constant 0 : index
    %c0_16 = arith.constant 0 : index
    %20 = vector.load %arg7[%c0_15, %c0_16] : memref<1x1xf32, #tpu.memory_space<vmem>>, vector<1x1xf32>
    %21 = vector.broadcast %20 : vector<1x1xf32> to vector<1x128xf32>
    %22 = arith.addf %19, %21 : vector<1x128xf32>
    %c0_17 = arith.constant 0 : index
    %c0_18 = arith.constant 0 : index
    %23 = vector.load %arg8[%c0_17, %c0_18] : memref<1x128xf32, #tpu.memory_space<vmem>>, vector<1x128xf32>
    tpu.vector_store %arg8[%c0_17, %c0_18], %22 {strides = array<i32>} : memref<1x128xf32, #tpu.memory_space<vmem>>, vector<1x128xf32>,
    return
  }
  func.func @transform_0(%arg0: i32) -> (i32, i32) {
    %c0_i32 = arith.constant 0 : i32
    %c0_i32_0 = arith.constant 0 : i32
    return %arg0, %c0_i32 : i32, i32
  }
  func.func @transform_1(%arg0: i32) -> (i32, i32) {
    %c0_i32 = arith.constant 0 : i32
    %c0_i32_0 = arith.constant 0 : i32
    %c0_i32_1 = arith.constant 0 : i32
    return %c0_i32, %c0_i32_0 : i32, i32
  }
  func.func @transform_2(%arg0: i32) -> (i32, i32) {
    %c0_i32 = arith.constant 0 : i32
    %c0_i32_0 = arith.constant 0 : i32
    %c0_i32_1 = arith.constant 0 : i32
    return %c0_i32, %c0_i32_0 : i32, i32
  }
  func.func @transform_3(%arg0: i32) -> (i32, i32) {
    %c0_i32 = arith.constant 0 : i32
    %c0_i32_0 = arith.constant 0 : i32
    %c0_i32_1 = arith.constant 0 : i32
    return %c0_i32, %c0_i32_0 : i32, i32
  }
  func.func @transform_4(%arg0: i32) -> (i32, i32) {
    %c0_i32 = arith.constant 0 : i32
    %c0_i32_0 = arith.constant 0 : i32
    %c0_i32_1 = arith.constant 0 : i32
    return %c0_i32, %c0_i32_0 : i32, i32
  }
  func.func @transform_5(%arg0: i32) -> (i32, i32) {
    %c0_i32 = arith.constant 0 : i32
    %c0_i32_0 = arith.constant 0 : i32
    %c0_i32_1 = arith.constant 0 : i32
    return %c0_i32, %c0_i32_0 : i32, i32
  }
  func.func @transform_6(%arg0: i32) -> (i32, i32) {
    %c0_i32 = arith.constant 0 : i32
    %c0_i32_0 = arith.constant 0 : i32
    %c0_i32_1 = arith.constant 0 : i32
    return %c0_i32, %c0_i32_0 : i32, i32
  }
  func.func @transform_7(%arg0: i32) -> (i32, i32) {
    %c0_i32 = arith.constant 0 : i32
    %c0_i32_0 = arith.constant 0 : i32
    return %c0_i32, %arg0 : i32, i32
  }
}

</mosaic_0001>

<llo_original>
// kernel: tpu_custom_call.1
$region0: #{tpu_custom_call.1}
  #allocation0 [shape = 'u32[]', space=smem, size = 0x4, offset = 0x4, fixed_abs, tag = 'smem constant byte address 0x4 - core index']
  #allocation1 [shape = 'u32[72,128]{1,0:T(1,128)}', space=vmem, size = 0x9000, scoped, tag = 'internal scratch']
  #allocation2 [shape = 'f32[1,1]{1,0:T(1,128)S(1)}', space=vmem, size = 0x200, scoped, tag = 'scoped memory for tpu_custom_call.1']
  %s0 = inlined_call_operand.vmem [shape: f32[256,64], index: 0, kind: input, shape index: {}]
  %s1 = inlined_call_operand.vmem [shape: f32[64,128], index: 1, kind: input, shape index: {}]
  %s2 = inlined_call_operand.vmem [shape: f32[1,128], index: 2, kind: input, shape index: {}]
  %s3 = inlined_call_operand.vmem [shape: f32[128,32], index: 3, kind: input, shape index: {}]
  %s4 = inlined_call_operand.vmem [shape: f32[1,32], index: 4, kind: input, shape index: {}]
  %s5 = inlined_call_operand.vmem [shape: f32[1,32], index: 5, kind: input, shape index: {}]
  %s6 = inlined_call_operand.<no memory space> [shape: f32[1,1], index: 6, kind: input, shape index: {}]
  %s7 = inlined_call_operand.hbm [shape: f32[1,256], index: 7, kind: output, shape index: {}]
  %s8 = sld [smem:[#allocation0]]
  $region61: #{tpu_custom_call.1} parent=0
    _
  %s10 = ssub.s32 1, %s8
  %s11 = scalar_select 0, %s10, %s8
  %v12 = vstv %s6
  %13 = vst [vmem:[#allocation2] sm:$0x1] %v12
  $region1: #{tpu_custom_call.1} parent=0
    #allocation3 [shape = 'u8[1024]{0}', space=vmem, size = 0x400, scoped, tag = 'output window, operand 0']
    #allocation4 [shape = 's32[2]{0}', space=sflag, size = 0x8, scoped, tag = 'scoped memory for tpu_custom_call.1']
    %14 = vsyncpa [#allocation4], 0
    %s15 = scalar_lea.sflag [#allocation4], 1
    %16 = vsyncpa %s15, 0
    loop: start=0, step=1, limit=4
    $region2: #{tpu_custom_call.1} parent=1 // loop_pre_header
      _
    $region3: #{tpu_custom_call.1} parent=1 // loop_header
      %s18 = sphi 0, %s22
      %p19 = scmp.ge.s32.totalorder %s18, 4
      %s28 = sphi 0, %s30
      %s31 = sphi 0, %s28
      %s32 = sphi 0, %s31
      %s48 = sphi 0, %s32
      %s52 = sphi 0, %s52
      %s54 = sphi 0, %s52
      %s55 = sphi 0, %s54
      %s69 = sphi 0, %s55
      %s73 = sphi 0, %s73
      %s75 = sphi 0, %s73
      %s76 = sphi 0, %s75
      %s90 = sphi 0, %s76
      %s94 = sphi 0, %s94
      %s96 = sphi 0, %s94
      %s97 = sphi 0, %s96
      %s111 = sphi 0, %s97
      %s115 = sphi 0, %s115
      %s117 = sphi 0, %s115
      %s118 = sphi 0, %s117
      %s132 = sphi 0, %s118
      %s136 = sphi 0, %s136
      %s138 = sphi 0, %s136
      %s139 = sphi 0, %s138
      %s153 = sphi 0, %s139
      %s157 = sphi 0, %s157
      %s159 = sphi 0, %s157
      %s160 = sphi 0, %s159
      %s174 = sphi 0, %s160
      %s180 = sphi 0, %s182
      %s183 = sphi 0, %s180
      %s184 = sphi 0, %s183
      %s200 = sphi 0, %s184
    $region4: #{tpu_custom_call.1} parent=1 // loop_header_branch
      %21 = sbr.rel (%p19) target = $region8
    $region5: #{tpu_custom_call.1} parent=1 // loop_body
      %s23 = ssub.s32 %s18, 1
      %s24 = ssub.s32 %s18, 2
      %s25 = sadd.s32 %s18, 1
      %s26 = ssub.s32 %s18, %s25
      %p27 = scmp.eq.s32.totalorder %s26, 0
      %s29 = sadd.s32 %s28, 1
      %s30 = scalar_select %p27, %s28, %s29
      %p33 = pneg %p27
      %p34 = scmp.eq.s32.totalorder %s18, 1
      %p35 = por %p33, %p34
      %p36 = scmp.ne.s32.totalorder %s28, %s31
      %p37 = scmp.eq.s32.totalorder %s18, 0
      %p38 = por %p36, %p37
      %p39 = scmp.ne.s32.totalorder %s28, %s31
      %p40 = scmp.eq.s32.totalorder %s23, 1
      %p41 = por %p39, %p40
      %p42 = scmp.ne.s32.totalorder %s31, %s32
      %p43 = scmp.eq.s32.totalorder %s23, 0
      %p44 = por %p42, %p43
      %p45 = scmp.ne.s32.totalorder %s31, %s32
      %p46 = scmp.eq.s32.totalorder %s24, 1
      %p47 = por %p45, %p46
      %p49 = scmp.ne.s32.totalorder %s32, %s48
      %p50 = scmp.eq.s32.totalorder %s24, 0
      %p51 = por %p49, %p50
      %s53 = sadd.s32 %s52, 1
      %p56 = scmp.eq.s32.totalorder %s18, 1
      %p57 = scmp.ne.s32.totalorder %s52, %s54
      %p58 = scmp.eq.s32.totalorder %s18, 0
      %p59 = por %p57, %p58
      %p60 = scmp.ne.s32.totalorder %s52, %s54
      %p61 = scmp.eq.s32.totalorder %s23, 1
      %p62 = por %p60, %p61
      %p63 = scmp.ne.s32.totalorder %s54, %s55
      %p64 = scmp.eq.s32.totalorder %s23, 0
      %p65 = por %p63, %p64
      %p66 = scmp.ne.s32.totalorder %s54, %s55
      %p67 = scmp.eq.s32.totalorder %s24, 1
      %p68 = por %p66, %p67
      %p70 = scmp.ne.s32.totalorder %s55, %s69
      %p71 = scmp.eq.s32.totalorder %s24, 0
      %p72 = por %p70, %p71
      %s74 = sadd.s32 %s73, 1
      %p77 = scmp.eq.s32.totalorder %s18, 1
      %p78 = scmp.ne.s32.totalorder %s73, %s75
      %p79 = scmp.eq.s32.totalorder %s18, 0
      %p80 = por %p78, %p79
      %p81 = scmp.ne.s32.totalorder %s73, %s75
      %p82 = scmp.eq.s32.totalorder %s23, 1
      %p83 = por %p81, %p82
      %p84 = scmp.ne.s32.totalorder %s75, %s76
      %p85 = scmp.eq.s32.totalorder %s23, 0
      %p86 = por %p84, %p85
      %p87 = scmp.ne.s32.totalorder %s75, %s76
      %p88 = scmp.eq.s32.totalorder %s24, 1
      %p89 = por %p87, %p88
      %p91 = scmp.ne.s32.totalorder %s76, %s90
      %p92 = scmp.eq.s32.totalorder %s24, 0
      %p93 = por %p91, %p92
      %s95 = sadd.s32 %s94, 1
      %p98 = scmp.eq.s32.totalorder %s18, 1
      %p99 = scmp.ne.s32.totalorder %s94, %s96
      %p100 = scmp.eq.s32.totalorder %s18, 0
      %p101 = por %p99, %p100
      %p102 = scmp.ne.s32.totalorder %s94, %s96
      %p103 = scmp.eq.s32.totalorder %s23, 1
      %p104 = por %p102, %p103
      %p105 = scmp.ne.s32.totalorder %s96, %s97
      %p106 = scmp.eq.s32.totalorder %s23, 0
      %p107 = por %p105, %p106
      %p108 = scmp.ne.s32.totalorder %s96, %s97
      %p109 = scmp.eq.s32.totalorder %s24, 1
      %p110 = por %p108, %p109
      %p112 = scmp.ne.s32.totalorder %s97, %s111
      %p113 = scmp.eq.s32.totalorder %s24, 0
      %p114 = por %p112, %p113
      %s116 = sadd.s32 %s115, 1
      %p119 = scmp.eq.s32.totalorder %s18, 1
      %p120 = scmp.ne.s32.totalorder %s115, %s117
      %p121 = scmp.eq.s32.totalorder %s18, 0
      %p122 = por %p120, %p121
      %p123 = scmp.ne.s32.totalorder %s115, %s117
      %p124 = scmp.eq.s32.totalorder %s23, 1
      %p125 = por %p123, %p124
      %p126 = scmp.ne.s32.totalorder %s117, %s118
      %p127 = scmp.eq.s32.totalorder %s23, 0
      %p128 = por %p126, %p127
      %p129 = scmp.ne.s32.totalorder %s117, %s118
      %p130 = scmp.eq.s32.totalorder %s24, 1
      %p131 = por %p129, %p130
      %p133 = scmp.ne.s32.totalorder %s118, %s132
      %p134 = scmp.eq.s32.totalorder %s24, 0
      %p135 = por %p133, %p134
      %s137 = sadd.s32 %s136, 1
      %p140 = scmp.eq.s32.totalorder %s18, 1
      %p141 = scmp.ne.s32.totalorder %s136, %s138
      %p142 = scmp.eq.s32.totalorder %s18, 0
      %p143 = por %p141, %p142
      %p144 = scmp.ne.s32.totalorder %s136, %s138
      %p145 = scmp.eq.s32.totalorder %s23, 1
      %p146 = por %p144, %p145
      %p147 = scmp.ne.s32.totalorder %s138, %s139
      %p148 = scmp.eq.s32.totalorder %s23, 0
      %p149 = por %p147, %p148
      %p150 = scmp.ne.s32.totalorder %s138, %s139
      %p151 = scmp.eq.s32.totalorder %s24, 1
      %p152 = por %p150, %p151
      %p154 = scmp.ne.s32.totalorder %s139, %s153
      %p155 = scmp.eq.s32.totalorder %s24, 0
      %p156 = por %p154, %p155
      %s158 = sadd.s32 %s157, 1
      %p161 = scmp.eq.s32.totalorder %s18, 1
      %p162 = scmp.ne.s32.totalorder %s157, %s159
      %p163 = scmp.eq.s32.totalorder %s18, 0
      %p164 = por %p162, %p163
      %p165 = scmp.ne.s32.totalorder %s157, %s159
      %p166 = scmp.eq.s32.totalorder %s23, 1
      %p167 = por %p165, %p166
      %p168 = scmp.ne.s32.totalorder %s159, %s160
      %p169 = scmp.eq.s32.totalorder %s23, 0
      %p170 = por %p168, %p169
      %p171 = scmp.ne.s32.totalorder %s159, %s160
      %p172 = scmp.eq.s32.totalorder %s24, 1
      %p173 = por %p171, %p172
      %p175 = scmp.ne.s32.totalorder %s160, %s174
      %p176 = scmp.eq.s32.totalorder %s24, 0
      %p177 = por %p175, %p176
      %s178 = ssub.s32 %s18, %s25
      %p179 = scmp.eq.s32.totalorder %s178, 0
      %s181 = sadd.s32 %s180, 1
      %s182 = scalar_select %p179, %s180, %s181
      %p185 = pneg %p179
      %p186 = scmp.eq.s32.totalorder %s18, 1
      %p187 = por %p185, %p186
      %p188 = scmp.ne.s32.totalorder %s180, %s183
      %p189 = scmp.eq.s32.totalorder %s18, 0
      %p190 = por %p188, %p189
      %p191 = scmp.ne.s32.totalorder %s180, %s183
      %p192 = scmp.eq.s32.totalorder %s23, 1
      %p193 = por %p191, %p192
      %p194 = scmp.ne.s32.totalorder %s183, %s184
      %p195 = scmp.eq.s32.totalorder %s23, 0
      %p196 = por %p194, %p195
      %p197 = scmp.ne.s32.totalorder %s183, %s184
      %p198 = scmp.eq.s32.totalorder %s24, 1
      %p199 = por %p197, %p198
      %p201 = scmp.ne.s32.totalorder %s184, %s200
      %p202 = scmp.eq.s32.totalorder %s24, 0
      %p203 = por %p201, %p202
      %p204 = scmp.le.s32.totalorder 1, %s18
      %p205 = scmp.lt.s32.totalorder %s18, 3
      %p206 = pnand %p204, %p205
      %p207 = pneg %p206
      // Predicated region
      $region9: #{tpu_custom_call.1} parent=5 // pred_check
        _
      $region10: #{tpu_custom_call.1} parent=5 // pred_check_branch
        %209 = sbr.rel (%p206) target = $region12
      $region11: #{tpu_custom_call.1} parent=5 // pred_region
        %s210 = ssub.s32 %s18, 1
        // Predicated region
        $region13: #{tpu_custom_call.1} parent=11 // pred_check
          %p211 = pneg %p65
        $region14: #{tpu_custom_call.1} parent=11 // pred_check_branch
          %213 = sbr.rel (%p211) target = $region16
        $region15: #{tpu_custom_call.1} parent=11 // pred_region
          _
        $region16: #{tpu_custom_call.1} parent=11 // pred_fallthru
          _
        // Predicated region
        $region17: #{tpu_custom_call.1} parent=11 // pred_check
          %p214 = pneg %p86
        $region18: #{tpu_custom_call.1} parent=11 // pred_check_branch
          %216 = sbr.rel (%p214) target = $region20
        $region19: #{tpu_custom_call.1} parent=11 // pred_region
          _
        $region20: #{tpu_custom_call.1} parent=11 // pred_fallthru
          _
        // Predicated region
        $region21: #{tpu_custom_call.1} parent=11 // pred_check
          %p217 = pneg %p107
        $region22: #{tpu_custom_call.1} parent=11 // pred_check_branch
          %219 = sbr.rel (%p217) target = $region24
        $region23: #{tpu_custom_call.1} parent=11 // pred_region
          _
        $region24: #{tpu_custom_call.1} parent=11 // pred_fallthru
          _
        // Predicated region
        $region25: #{tpu_custom_call.1} parent=11 // pred_check
          %p220 = pneg %p128
        $region26: #{tpu_custom_call.1} parent=11 // pred_check_branch
          %222 = sbr.rel (%p220) target = $region28
        $region27: #{tpu_custom_call.1} parent=11 // pred_region
          _
        $region28: #{tpu_custom_call.1} parent=11 // pred_fallthru
          _
        // Predicated region
        $region29: #{tpu_custom_call.1} parent=11 // pred_check
          %p223 = pneg %p149
        $region30: #{tpu_custom_call.1} parent=11 // pred_check_branch
          %225 = sbr.rel (%p223) target = $region32
        $region31: #{tpu_custom_call.1} parent=11 // pred_region
          _
        $region32: #{tpu_custom_call.1} parent=11 // pred_fallthru
          _
        // Predicated region
        $region33: #{tpu_custom_call.1} parent=11 // pred_check
          %p226 = pneg %p170
        $region34: #{tpu_custom_call.1} parent=11 // pred_check_branch
          %228 = sbr.rel (%p226) target = $region36
        $region35: #{tpu_custom_call.1} parent=11 // pred_region
          _
        $region36: #{tpu_custom_call.1} parent=11 // pred_fallthru
          _
      $region12: #{tpu_custom_call.1} parent=5 // pred_fallthru
        _
      %p229 = scmp.lt.s32.totalorder %s18, 2
      // Predicated region
      $region37: #{tpu_custom_call.1} parent=5 // pred_check
        %p230 = pneg %p229
      $region38: #{tpu_custom_call.1} parent=5 // pred_check_branch
        %232 = sbr.rel (%p230) target = $region40
      $region39: #{tpu_custom_call.1} parent=5 // pred_region
        // Predicated region
        $region41: #{tpu_custom_call.1} parent=39 // pred_check
          %p233 = pneg %p38
        $region42: #{tpu_custom_call.1} parent=39 // pred_check_branch
          %235 = sbr.rel (%p233) target = $region44
        $region43: #{tpu_custom_call.1} parent=39 // pred_region
          %s236 = smul.u32 16, %s18
          %p237 = scmp.lt.s32.totalorder %s236, 31
          %s238 = scalar_select %p237, %s236, 31
          %s239 = smul.addr %s238, 8
          %s240 = scalar_lea.vmem %s0, %s239
          %s241 = smul.u32 16, %s18
        $region44: #{tpu_custom_call.1} parent=39 // pred_fallthru
          _
      $region40: #{tpu_custom_call.1} parent=5 // pred_fallthru
        _
      %p242 = scmp.le.s32.totalorder 1, %s18
      %p243 = scmp.lt.s32.totalorder %s18, 3
      %p244 = pnand %p242, %p243
      %p245 = pneg %p244
      // Predicated region
      $region45: #{tpu_custom_call.1} parent=5 // pred_check
        _
      $region46: #{tpu_custom_call.1} parent=5 // pred_check_branch
        %247 = sbr.rel (%p244) target = $region48
      $region47: #{tpu_custom_call.1} parent=5 // pred_region
        %s248 = ssub.s32 %s18, 1
        %s249 = smul.u32 16, %s23
        %p250 = scmp.lt.s32.totalorder %s249, 31
        %s251 = scalar_select %p250, %s249, 31
        %s252 = smul.addr %s251, 8
        %s253 = scalar_lea.vmem %s0, %s252
        %p254 = pneg %p44
        %p255 = pneg %p41
        %p256 = pneg %p65
        %p257 = pneg %p62
        %p258 = pneg %p86
        %p259 = pneg %p83
        %p260 = pneg %p107
        %p261 = pneg %p104
        %p262 = pneg %p128
        %p263 = pneg %p125
        %p264 = pneg %p149
        %p265 = pneg %p146
        %p266 = pneg %p170
        %p267 = pneg %p167
        %p268 = pneg %p196
        %p269 = pneg %p193
        %s270 = sand.u32 %s183, 1
        %s271 = scalar_lea.sflag [#allocation4], %s270
        %s272 = sand.u32 %s183, 1
        %s273 = scalar_lea.vmem [#allocation3], %s272
        %s274 = smul.u32 16, %s23
        %p275 = scmp.lt.s32.totalorder %s274, 31
        %s276 = scalar_select %p275, %s274, 31
        %s277 = smul.addr %s276, 8
        %s278 = scalar_lea.vmem %s0, %s277
        %s279 = smul.u32 16, %s23
        %v280 = vld [vmem:[%s278] sm:$0xff]
        %v281 = vld [vmem:[%s278 + $0x8] sm:$0xff]
        %v282 = vld [vmem:[%s278 + $0x10] sm:$0xff]
        %v283 = vld [vmem:[%s278 + $0x18] sm:$0xff]
        %v284 = vld [vmem:[%s278 + $0x20] sm:$0xff]
        %v285 = vld [vmem:[%s278 + $0x28] sm:$0xff]
        %v286 = vld [vmem:[%s278 + $0x30] sm:$0xff]
        %v287 = vld [vmem:[%s278 + $0x38] sm:$0xff]
        %v288 = vld [vmem:[%s278 + $0x40] sm:$0xff]
        %v289 = vld [vmem:[%s278 + $0x48] sm:$0xff]
        %v290 = vld [vmem:[%s278 + $0x50] sm:$0xff]
        %v291 = vld [vmem:[%s278 + $0x58] sm:$0xff]
        %v292 = vld [vmem:[%s278 + $0x60] sm:$0xff]
        %v293 = vld [vmem:[%s278 + $0x68] sm:$0xff]
        %v294 = vld [vmem:[%s278 + $0x70] sm:$0xff]
        %v295 = vld [vmem:[%s278 + $0x78] sm:$0xff]
        %v296 = vld [vmem:[%s1] sm:$0xff]
        %v297 = vld [vmem:[%s1 + $0x8] sm:$0xff]
        %v298 = vld [vmem:[%s1 + $0x10] sm:$0xff]
        %v299 = vld [vmem:[%s1 + $0x18] sm:$0xff]
        %v300 = vld [vmem:[%s1 + $0x20] sm:$0xff]
        %v301 = vld [vmem:[%s1 + $0x28] sm:$0xff]
        %v302 = vld [vmem:[%s1 + $0x30] sm:$0xff]
        %v303 = vld [vmem:[%s1 + $0x38] sm:$0xff]
        %v304 = vld [vmem:[%s2] sm:$0x1]
        %v306 = vperm.slane %v304, 0
        %vm308 = vcmask 523264
        %v310 = vsel %vm308, %v280, 0
        %v313 = vsel %vm308, %v281, 0
        %v316 = vsel %vm308, %v282, 0
        %v319 = vsel %vm308, %v283, 0
        %v322 = vsel %vm308, %v284, 0
        %v325 = vsel %vm308, %v285, 0
        %v328 = vsel %vm308, %v286, 0
        %v331 = vsel %vm308, %v287, 0
        %v334 = vsel %vm308, %v288, 0
        %v337 = vsel %vm308, %v289, 0
        %v340 = vsel %vm308, %v290, 0
        %v343 = vsel %vm308, %v291, 0
        %v346 = vsel %vm308, %v292, 0
        %v349 = vsel %vm308, %v293, 0
        %v352 = vsel %vm308, %v294, 0
        %v355 = vsel %vm308, %v295, 0
        %357 = vmatpush.msra.mxu0 0.0
        %358 = vmatpush.msra.mxu0 0.0
        %359 = vmatpush.msra.mxu0 0.0
        %360 = vmatpush.msra.mxu0 0.0
        %361 = vmatpush.msra.mxu0 0.0
        %362 = vmatpush.msra.mxu0 0.0
        %363 = vmatpush.msra.mxu0 0.0
        %364 = vmatpush.msra.mxu0 0.0
        %365 = vmatpush.msra.mxu0 %v303
        %366 = vmatpush.msra.mxu0 %v302
        %367 = vmatpush.msra.mxu0 %v301
        %368 = vmatpush.msra.mxu0 %v300
        %369 = vmatpush.msra.mxu0 %v299
        %370 = vmatpush.msra.mxu0 %v298
        %371 = vmatpush.msra.mxu0 %v297
        %372 = vmatpush.msra.mxu0 %v296
        %373 = vmatmul.f32.gmra.mxu0 %v310
        %v374 = vpop.f32.mrf.mxu0
        %v375 = vadd.f32 %v306, %v374
        %376 = vmatmul.f32.gmra.mxu0 %v313
        %v377 = vpop.f32.mrf.mxu0
        %v378 = vadd.f32 %v306, %v377
        %379 = vmatmul.f32.gmra.mxu0 %v316
        %v380 = vpop.f32.mrf.mxu0
        %v381 = vadd.f32 %v306, %v380
        %382 = vmatmul.f32.gmra.mxu0 %v319
        %v383 = vpop.f32.mrf.mxu0
        %v384 = vadd.f32 %v306, %v383
        %385 = vmatmul.f32.gmra.mxu0 %v322
        %v386 = vpop.f32.mrf.mxu0
        %v387 = vadd.f32 %v306, %v386
        %388 = vmatmul.f32.gmra.mxu0 %v325
        %v389 = vpop.f32.mrf.mxu0
        %v390 = vadd.f32 %v306, %v389
        %391 = vmatmul.f32.gmra.mxu0 %v328
        %v392 = vpop.f32.mrf.mxu0
        %v393 = vadd.f32 %v306, %v392
        %394 = vmatmul.f32.gmra.mxu0 %v331
        %v395 = vpop.f32.mrf.mxu0
        %v396 = vadd.f32 %v306, %v395
        %397 = vmatmul.f32.gmra.mxu0 %v334
        %v398 = vpop.f32.mrf.mxu0
        %v399 = vadd.f32 %v306, %v398
        %400 = vmatmul.f32.gmra.mxu0 %v337
        %v401 = vpop.f32.mrf.mxu0
        %v402 = vadd.f32 %v306, %v401
        %403 = vmatmul.f32.gmra.mxu0 %v340
        %v404 = vpop.f32.mrf.mxu0
        %v405 = vadd.f32 %v306, %v404
        %406 = vmatmul.f32.gmra.mxu0 %v343
        %v407 = vpop.f32.mrf.mxu0
        %v408 = vadd.f32 %v306, %v407
        %409 = vmatmul.f32.gmra.mxu0 %v346
        %v410 = vpop.f32.mrf.mxu0
        %v411 = vadd.f32 %v306, %v410
        %412 = vmatmul.f32.gmra.mxu0 %v349
        %v413 = vpop.f32.mrf.mxu0
        %v414 = vadd.f32 %v306, %v413
        %415 = vmatmul.f32.gmra.mxu0 %v352
        %v416 = vpop.f32.mrf.mxu0
        %v417 = vadd.f32 %v306, %v416
        %418 = vmatmul.f32.gmra.mxu0 %v355
        %v419 = vpop.f32.mrf.mxu0
        %v420 = vadd.f32 %v306, %v419
        %421 = vdwg.mxu0
        %v422 = vmax.f32 %v375, 0.0
        %v423 = vmax.f32 %v378, 0.0
        %v424 = vmax.f32 %v381, 0.0
        %v425 = vmax.f32 %v384, 0.0
        %v426 = vmax.f32 %v387, 0.0
        %v427 = vmax.f32 %v390, 0.0
        %v428 = vmax.f32 %v393, 0.0
        %v429 = vmax.f32 %v396, 0.0
        %v430 = vmax.f32 %v399, 0.0
        %v431 = vmax.f32 %v402, 0.0
        %v432 = vmax.f32 %v405, 0.0
        %v433 = vmax.f32 %v408, 0.0
        %v434 = vmax.f32 %v411, 0.0
        %v435 = vmax.f32 %v414, 0.0
        %v436 = vmax.f32 %v417, 0.0
        %v437 = vmax.f32 %v420, 0.0
        %v438 = vld [vmem:[%s3] sm:$0xff]
        %v439 = vld [vmem:[%s3 + $0x8] sm:$0xff]
        %v440 = vld [vmem:[%s3 + $0x10] sm:$0xff]
        %v441 = vld [vmem:[%s3 + $0x18] sm:$0xff]
        %v442 = vld [vmem:[%s3 + $0x20] sm:$0xff]
        %v443 = vld [vmem:[%s3 + $0x28] sm:$0xff]
        %v444 = vld [vmem:[%s3 + $0x30] sm:$0xff]
        %v445 = vld [vmem:[%s3 + $0x38] sm:$0xff]
        %v446 = vld [vmem:[%s3 + $0x40] sm:$0xff]
        %v447 = vld [vmem:[%s3 + $0x48] sm:$0xff]
        %v448 = vld [vmem:[%s3 + $0x50] sm:$0xff]
        %v449 = vld [vmem:[%s3 + $0x58] sm:$0xff]
        %v450 = vld [vmem:[%s3 + $0x60] sm:$0xff]
        %v451 = vld [vmem:[%s3 + $0x68] sm:$0xff]
        %v452 = vld [vmem:[%s3 + $0x70] sm:$0xff]
        %v453 = vld [vmem:[%s3 + $0x78] sm:$0xff]
        %v454 = vld [vmem:[%s4] sm:$0x1]
        %v456 = vperm.slane %v454, 0
        %458 = vmatpush.msra.mxu0 %v453
        %459 = vmatpush.msra.mxu0 %v452
        %460 = vmatpush.msra.mxu0 %v451
        %461 = vmatpush.msra.mxu0 %v450
        %462 = vmatpush.msra.mxu0 %v449
        %463 = vmatpush.msra.mxu0 %v448
        %464 = vmatpush.msra.mxu0 %v447
        %465 = vmatpush.msra.mxu0 %v446
        %466 = vmatpush.msra.mxu0 %v445
        %467 = vmatpush.msra.mxu0 %v444
        %468 = vmatpush.msra.mxu0 %v443
        %469 = vmatpush.msra.mxu0 %v442
        %470 = vmatpush.msra.mxu0 %v441
        %471 = vmatpush.msra.mxu0 %v440
        %472 = vmatpush.msra.mxu0 %v439
        %473 = vmatpush.msra.mxu0 %v438
        %474 = vmatmul.f32.gmra.mxu0 %v422
        %v475 = vpop.f32.mrf.mxu0
        %v476 = vadd.f32 %v456, %v475
        %477 = vmatmul.f32.gmra.mxu0 %v423
        %v478 = vpop.f32.mrf.mxu0
        %v479 = vadd.f32 %v456, %v478
        %480 = vmatmul.f32.gmra.mxu0 %v424
        %v481 = vpop.f32.mrf.mxu0
        %v482 = vadd.f32 %v456, %v481
        %483 = vmatmul.f32.gmra.mxu0 %v425
        %v484 = vpop.f32.mrf.mxu0
        %v485 = vadd.f32 %v456, %v484
        %486 = vmatmul.f32.gmra.mxu0 %v426
        %v487 = vpop.f32.mrf.mxu0
        %v488 = vadd.f32 %v456, %v487
        %489 = vmatmul.f32.gmra.mxu0 %v427
        %v490 = vpop.f32.mrf.mxu0
        %v491 = vadd.f32 %v456, %v490
        %492 = vmatmul.f32.gmra.mxu0 %v428
        %v493 = vpop.f32.mrf.mxu0
        %v494 = vadd.f32 %v456, %v493
        %495 = vmatmul.f32.gmra.mxu0 %v429
        %v496 = vpop.f32.mrf.mxu0
        %v497 = vadd.f32 %v456, %v496
        %498 = vmatmul.f32.gmra.mxu0 %v430
        %v499 = vpop.f32.mrf.mxu0
        %v500 = vadd.f32 %v456, %v499
        %501 = vmatmul.f32.gmra.mxu0 %v431
        %v502 = vpop.f32.mrf.mxu0
        %v503 = vadd.f32 %v456, %v502
        %504 = vmatmul.f32.gmra.mxu0 %v432
        %v505 = vpop.f32.mrf.mxu0
        %v506 = vadd.f32 %v456, %v505
        %507 = vmatmul.f32.gmra.mxu0 %v433
        %v508 = vpop.f32.mrf.mxu0
        %v509 = vadd.f32 %v456, %v508
        %510 = vmatmul.f32.gmra.mxu0 %v434
        %v511 = vpop.f32.mrf.mxu0
        %v512 = vadd.f32 %v456, %v511
        %513 = vmatmul.f32.gmra.mxu0 %v435
        %v514 = vpop.f32.mrf.mxu0
        %v515 = vadd.f32 %v456, %v514
        %516 = vmatmul.f32.gmra.mxu0 %v436
        %v517 = vpop.f32.mrf.mxu0
        %v518 = vadd.f32 %v456, %v517
        %519 = vmatmul.f32.gmra.mxu0 %v437
        %v520 = vpop.f32.mrf.mxu0
        %v521 = vadd.f32 %v456, %v520
        %522 = vdwg.mxu0
        %v523 = vmax.f32 %v476, 0.0
        %v524 = vmax.f32 %v479, 0.0
        %v525 = vmax.f32 %v482, 0.0
        %v526 = vmax.f32 %v485, 0.0
        %v527 = vmax.f32 %v488, 0.0
        %v528 = vmax.f32 %v491, 0.0
        %v529 = vmax.f32 %v494, 0.0
        %v530 = vmax.f32 %v497, 0.0
        %v531 = vmax.f32 %v500, 0.0
        %v532 = vmax.f32 %v503, 0.0
        %v533 = vmax.f32 %v506, 0.0
        %v534 = vmax.f32 %v509, 0.0
        %v535 = vmax.f32 %v512, 0.0
        %v536 = vmax.f32 %v515, 0.0
        %v537 = vmax.f32 %v518, 0.0
        %v538 = vmax.f32 %v521, 0.0
        %v539 = vld [vmem:[%s5] sm:$0x1]
        %v541 = vperm.slane %v539, 0
        %v543 = vmul.f32 %v523, %v541
        %v544 = vmul.f32 %v524, %v541
        %v545 = vmul.f32 %v525, %v541
        %v546 = vmul.f32 %v526, %v541
        %v547 = vmul.f32 %v527, %v541
        %v548 = vmul.f32 %v528, %v541
        %v549 = vmul.f32 %v529, %v541
        %v550 = vmul.f32 %v530, %v541
        %v551 = vmul.f32 %v531, %v541
        %v552 = vmul.f32 %v532, %v541
        %v553 = vmul.f32 %v533, %v541
        %v554 = vmul.f32 %v534, %v541
        %v555 = vmul.f32 %v535, %v541
        %v556 = vmul.f32 %v536, %v541
        %v557 = vmul.f32 %v537, %v541
        %v558 = vmul.f32 %v538, %v541
        %vm559 = vcmask 261120
        %v560 = vsel %vm559, %v543, 0.0
        %561 = vadd.xlane.f32.xlu0 %v560
        %v562 = vpop.xlane.xlu0 %561
        %v563 = vsel %vm559, %v544, 0.0
        %564 = vadd.xlane.f32.xlu0 %v563
        %v565 = vpop.xlane.xlu0 %564
        %v566 = vsel %vm559, %v545, 0.0
        %567 = vadd.xlane.f32.xlu0 %v566
        %v568 = vpop.xlane.xlu0 %567
        %v569 = vsel %vm559, %v546, 0.0
        %570 = vadd.xlane.f32.xlu0 %v569
        %v571 = vpop.xlane.xlu0 %570
        %v572 = vsel %vm559, %v547, 0.0
        %573 = vadd.xlane.f32.xlu0 %v572
        %v574 = vpop.xlane.xlu0 %573
        %v575 = vsel %vm559, %v548, 0.0
        %576 = vadd.xlane.f32.xlu0 %v575
        %v577 = vpop.xlane.xlu0 %576
        %v578 = vsel %vm559, %v549, 0.0
        %579 = vadd.xlane.f32.xlu0 %v578
        %v580 = vpop.xlane.xlu0 %579
        %v581 = vsel %vm559, %v550, 0.0
        %582 = vadd.xlane.f32.xlu0 %v581
        %v583 = vpop.xlane.xlu0 %582
        %v584 = vsel %vm559, %v551, 0.0
        %585 = vadd.xlane.f32.xlu0 %v584
        %v586 = vpop.xlane.xlu0 %585
        %v587 = vsel %vm559, %v552, 0.0
        %588 = vadd.xlane.f32.xlu0 %v587
        %v589 = vpop.xlane.xlu0 %588
        %v590 = vsel %vm559, %v553, 0.0
        %591 = vadd.xlane.f32.xlu0 %v590
        %v592 = vpop.xlane.xlu0 %591
        %v593 = vsel %vm559, %v554, 0.0
        %594 = vadd.xlane.f32.xlu0 %v593
        %v595 = vpop.xlane.xlu0 %594
        %v596 = vsel %vm559, %v555, 0.0
        %597 = vadd.xlane.f32.xlu0 %v596
        %v598 = vpop.xlane.xlu0 %597
        %v599 = vsel %vm559, %v556, 0.0
        %600 = vadd.xlane.f32.xlu0 %v599
        %v601 = vpop.xlane.xlu0 %600
        %v602 = vsel %vm559, %v557, 0.0
        %603 = vadd.xlane.f32.xlu0 %v602
        %v604 = vpop.xlane.xlu0 %603
        %v605 = vsel %vm559, %v558, 0.0
        %606 = vadd.xlane.f32.xlu0 %v605
        %v607 = vpop.xlane.xlu0 %606
        %v608 = vld [vmem:[#allocation2] sm:$0x1]
        %610 = vset.pattern.permute.xlu0 0
        %611 = vperm.xlu0 %610, %v608
        %v612 = vpop.permute.xlu0 %611
        %v614 = vperm.slane %v612, 0
        %v615 = vadd.f32 %v562, %v614
        %v616 = vadd.f32 %v565, %v614
        %v617 = vadd.f32 %v568, %v614
        %v618 = vadd.f32 %v571, %v614
        %v619 = vadd.f32 %v574, %v614
        %v620 = vadd.f32 %v577, %v614
        %v621 = vadd.f32 %v580, %v614
        %v622 = vadd.f32 %v583, %v614
        %v623 = vadd.f32 %v586, %v614
        %v624 = vadd.f32 %v589, %v614
        %v625 = vadd.f32 %v592, %v614
        %v626 = vadd.f32 %v595, %v614
        %v627 = vadd.f32 %v598, %v614
        %v628 = vadd.f32 %v601, %v614
        %v629 = vadd.f32 %v604, %v614
        %v630 = vadd.f32 %v607, %v614
        %v647 = vlaneseq
        %v648 = vand.u32 %v647, 127
        %v649 = vperm.slane %v615, %v648
        %v650 = vadd.s32 %v648, 4294967288
        %v651 = vperm.slane %v616, %v650
        %vm652 = vcmask 130112
        %v653 = vsel %vm652, %v651, %v649
        %v654 = vadd.s32 %v648, 4294967280
        %v655 = vperm.slane %v617, %v654
        %vm656 = vcmask 195712
        %v657 = vsel %vm656, %v655, %v653
        %v658 = vadd.s32 %v648, 4294967272
        %v659 = vperm.slane %v618, %v658
        %vm660 = vcmask 261312
        %v661 = vsel %vm660, %v659, %v657
        %v662 = vadd.s32 %v648, 4294967264
        %v663 = vperm.slane %v619, %v662
        %vm664 = vcmask 326912
        %v665 = vsel %vm664, %v663, %v661
        %v666 = vadd.s32 %v648, 4294967256
        %v667 = vperm.slane %v620, %v666
        %vm668 = vcmask 392512
        %v669 = vsel %vm668, %v667, %v665
        %v670 = vadd.s32 %v648, 4294967248
        %v671 = vperm.slane %v621, %v670
        %vm672 = vcmask 458112
        %v673 = vsel %vm672, %v671, %v669
        %v674 = vadd.s32 %v648, 4294967240
        %v675 = vperm.slane %v622, %v674
        %vm676 = vcmask 523712
        %v677 = vsel %vm676, %v675, %v673
        %v678 = vadd.s32 %v648, 4294967232
        %v679 = vperm.slane %v623, %v678
        %vm680 = vcmask 589312
        %v681 = vsel %vm680, %v679, %v677
        %v682 = vadd.s32 %v648, 4294967224
        %v683 = vperm.slane %v624, %v682
        %vm684 = vcmask 654912
        %v685 = vsel %vm684, %v683, %v681
        %v686 = vadd.s32 %v648, 4294967216
        %v687 = vperm.slane %v625, %v686
        %vm688 = vcmask 720512
        %v689 = vsel %vm688, %v687, %v685
        %v690 = vadd.s32 %v648, 4294967208
        %v691 = vperm.slane %v626, %v690
        %vm692 = vcmask 786112
        %v693 = vsel %vm692, %v691, %v689
        %v694 = vadd.s32 %v648, 4294967200
        %v695 = vperm.slane %v627, %v694
        %vm696 = vcmask 851712
        %v697 = vsel %vm696, %v695, %v693
        %v698 = vadd.s32 %v648, 4294967192
        %v699 = vperm.slane %v628, %v698
        %vm700 = vcmask 917312
        %v701 = vsel %vm700, %v699, %v697
        %v702 = vadd.s32 %v648, 4294967184
        %v703 = vperm.slane %v629, %v702
        %vm704 = vcmask 982912
        %v705 = vsel %vm704, %v703, %v701
        %v706 = vadd.s32 %v648, 4294967176
        %v707 = vperm.slane %v630, %v706
        %vm708 = vcmask 1048512
        %v709 = vsel %vm708, %v707, %v705
        %711 = vst [vmem:[%s273] sm:$0x1] %v709
        %s712 = sand.u32 %s183, 1
        %s713 = scalar_lea.sflag [#allocation4], %s712
        %s714 = sand.u32 %s183, 1
        %s715 = scalar_lea.vmem [#allocation3], %s714
        // Predicated region
        $region49: #{tpu_custom_call.1} parent=47 // pred_check
          %p716 = pneg %p193
        $region50: #{tpu_custom_call.1} parent=47 // pred_check_branch
          %718 = sbr.rel (%p716) target = $region52
        $region51: #{tpu_custom_call.1} parent=47 // pred_region
          %720 = vsyncadd %s713, 0
          %s721 = scalar_lea.hbm %s7, %s23
          %s723 = sshll.u32 %s715, 4
          %s724 = int_to_ptr.vmem [resolvable:$true] %s723
          %s725 = sshll.u32 %s721, 4
          %s726 = int_to_ptr.hbm [resolvable:$true] %s725
          %728 = dma.vmem_to_hbm [thread:$0]  %s724, 16, %s726, %s713
        $region52: #{tpu_custom_call.1} parent=47 // pred_fallthru
          _
      $region48: #{tpu_custom_call.1} parent=5 // pred_fallthru
        _
      %p729 = scmp.le.s32.totalorder 2, %s18
      // Predicated region
      $region53: #{tpu_custom_call.1} parent=5 // pred_check
        %p730 = pneg %p729
      $region54: #{tpu_custom_call.1} parent=5 // pred_check_branch
        %732 = sbr.rel (%p730) target = $region56
      $region55: #{tpu_custom_call.1} parent=5 // pred_region
        %s733 = ssub.s32 %s18, 2
        // Predicated region
        $region57: #{tpu_custom_call.1} parent=55 // pred_check
          %p734 = pneg %p199
        $region58: #{tpu_custom_call.1} parent=55 // pred_check_branch
          %736 = sbr.rel (%p734) target = $region60
        $region59: #{tpu_custom_call.1} parent=55 // pred_region
          %s737 = sand.u32 %s184, 1
          %s738 = scalar_lea.sflag [#allocation4], %s737
          %s739 = sand.u32 %s184, 1
          %s740 = scalar_lea.vmem [#allocation3], %s739
          %742 = dma.done %s738, 16
        $region60: #{tpu_custom_call.1} parent=55 // pred_fallthru
          _
      $region56: #{tpu_custom_call.1} parent=5 // pred_fallthru
        _
    $region6: #{tpu_custom_call.1} parent=1 // loop_footer
      %s22 = sadd.s32 1, %s18
    $region7: #{tpu_custom_call.1} parent=1 // loop_footer_branch
      %17 = sbr.rel target = $region3
    $region8: #{tpu_custom_call.1} parent=1 // loop_exit
      _
    %743 = vsyncpa [#allocation4], 1
    %s744 = scalar_lea.sflag [#allocation4], 1
    %745 = vsyncpa %s744, 1

</llo_original>
